<compile_context>
chip_gen: v7x
topology: tpu7x:2x2x1
jax: 0.10.0
libtpu: 0.0.40
codegen_flags: <defaults>
</compile_context>

<pallas_src>
import jax
import jax.numpy as jnp
from jax.experimental import pallas as pl
from jax.experimental.pallas import tpu as pltpu


def _round_up(x, m):
    return ((x + m - 1) // m) * m


def _pad_cols(arr, target):
    pad = target - arr.shape[1]
    return arr if pad == 0 else jnp.pad(arr, ((0, 0), (0, pad)))


def _pad_rows(arr, target):
    pad = target - arr.shape[0]
    return arr if pad == 0 else jnp.pad(arr, ((0, pad), (0, 0)))


def _make_b_network_kernel(num_layers):
    """Pallas kernel for the B_Network MLP (standardization pre-folded into layer 1).

    Ref order: (t, state, interp, W1_t, W1_s, W1_i, b1, W2, b2, ..., WL, bL, out)
    First layer:  x = state @ W1_s + interp @ W1_i + t * W1_t + b1
    Then: ReLU -> Linear for each remaining layer, no activation after the last.
    """

    def kernel(*refs):
        t_ref, s_ref, i_ref, wt_ref, ws_ref, wi_ref = refs[:6]
        out_ref = refs[-1]
        wb = refs[6:-1]  # b1, (W2, b2), ..., (WL, bL)

        x = (jnp.dot(s_ref[...], ws_ref[...], preferred_element_type=jnp.float32)
             + jnp.dot(i_ref[...], wi_ref[...], preferred_element_type=jnp.float32)
             + t_ref[...] * wt_ref[...]
             + wb[0][...])

        for li in range(1, num_layers):
            x = jnp.maximum(x, 0.0)
            w = wb[2 * li - 1][...]
            b = wb[2 * li][...]
            x = jnp.dot(x, w, preferred_element_type=jnp.float32) + b

        out_ref[...] = x.astype(out_ref.dtype)

    return kernel


def init_b_network_params(key, dimension_state, layer_widths, dtype=jnp.float32):
    """PyTorch-Linear-style init: U(-1/sqrt(fan_in), 1/sqrt(fan_in)).

    Weights stored as (in_features, out_features) so the kernel does x @ W + b.
    """
    input_dim = dimension_state * 2 + 1
    widths = list(layer_widths) + [dimension_state]
    params = []
    prev = input_dim
    for w_out in widths:
        key, kw, kb = jax.random.split(key, 3)
        bound = 1.0 / (prev ** 0.5)
        W = jax.random.uniform(kw, (prev, w_out), dtype=dtype, minval=-bound, maxval=bound)
        b = jax.random.uniform(kb, (1, w_out), dtype=dtype, minval=-bound, maxval=bound)
        params.append((W, b))
        prev = w_out
    return params


@jax.jit
def _b_network_impl(interpolant, state, t, params, state_mean, state_std):
    """Fold standardization into layer 1, lane-pad the MLP widths, tile the batch,
    and run the Pallas MLP."""
    N, d = state.shape
    dtype = state.dtype

    # time column (N, 1)
    if t.ndim == 0:
        t_ = jnp.full((N, 1), t, dtype=dtype)
    else:
        t_ = jnp.reshape(t, (N, 1)).astype(dtype)

    num_layers = len(params)
    widths = [p[0].shape[1] for p in params]            # h1, ..., d_out
    widths_p = [_round_up(w, 128) for w in widths]      # lane-padded widths
    out_dim = widths[-1]
    out_pad = widths_p[-1]

    # ---- fold standardization into the first Linear layer (exact algebra) ----
    W1, b1 = params[0]
    mean = jnp.reshape(state_mean.astype(jnp.float32), (d,))
    inv_std = 1.0 / jnp.reshape(state_std.astype(jnp.float32), (d,))
    W1_s = W1[1:d + 1, :]                                # (d, h1)
    W1_i = W1[d + 1:2 * d + 1, :]                        # (d, h1)
    w_t = _pad_cols(W1[0:1, :], widths_p[0]).astype(dtype)            # (1, h1p)  t-slot
    w_s = _pad_cols(W1_s * inv_std[:, None], widths_p[0]).astype(dtype)
    w_i = _pad_cols(W1_i * inv_std[:, None], widths_p[0]).astype(dtype)
    b1f = _pad_cols(b1 - jnp.reshape((mean * inv_std) @ (W1_s + W1_i), (1, -1)),
                    widths_p[0]).astype(dtype)

    # ---- zero-pad remaining layers to lane-aligned widths (exact: ReLU(0)=0, zero rows) ----
    flat_rest = [b1f]
    for li in range(1, num_layers):
        W, b = params[li]
        Wp = _pad_rows(_pad_cols(W, widths_p[li]), widths_p[li - 1])
        bp = _pad_cols(b, widths_p[li])
        flat_rest.append(Wp.astype(dtype))
        flat_rest.append(bp.astype(dtype))

    # ---- batch tiling: large row tiles, grid over batch, padded rows sliced off ----
    TM = min(1024, _round_up(N, 8))
    n_pad = _round_up(N, TM)
    if n_pad != N:
        pad = ((0, n_pad - N), (0, 0))
        t_ = jnp.pad(t_, pad)
        state_p = jnp.pad(state, pad)
        interp_p = jnp.pad(interpolant, pad)
    else:
        state_p = state
        interp_p = interpolant

    grid = (n_pad // TM,)
    row1_spec = pl.BlockSpec((TM, 1), lambda i: (i, 0))
    rowd_spec = pl.BlockSpec((TM, d), lambda i: (i, 0))

    def const_spec(arr):
        return pl.BlockSpec(arr.shape, lambda i: (0, 0))

    in_specs = ([row1_spec, rowd_spec, rowd_spec,
                 const_spec(w_t), const_spec(w_s), const_spec(w_i)]
                + [const_spec(p) for p in flat_rest])
    out_specs = pl.BlockSpec((TM, out_pad), lambda i: (i, 0))

    kernel = _make_b_network_kernel(num_layers)
    out = pl.pallas_call(
        kernel,
        grid=grid,
        in_specs=in_specs,
        out_specs=out_specs,
        out_shape=jax.ShapeDtypeStruct((n_pad, out_pad), dtype),
        compiler_params=pltpu.CompilerParams(
            dimension_semantics=("parallel",),
            vmem_limit_bytes=64 * 1024 * 1024,
        ),
    )(t_, state_p, interp_p, w_t, w_s, w_i, *flat_rest)

    out = out[:N, :out_dim]
    return jnp.squeeze(out)


def b_network_forward(interpolant, state, t, params, state_mean, state_std):
    """Pallas implementation of B_Network.forward.

    interpolant, state : (N, d) float32
    t                  : () or (N, 1) float32
    returns            : squeeze((N, d)) float32, matching the torch module.
    """
    return _b_network_impl(interpolant, state, t, tuple(params), state_mean, state_std)


def b_network_reference(interpolant, state, t, params, state_mean, state_std):
    """Plain-JAX reference of the torch forward, for a sanity check."""
    N, d = state.shape
    t_ = jnp.full((N, 1), t, dtype=state.dtype) if t.ndim == 0 else jnp.reshape(t, (N, 1))
    state_c = (state - state_mean) / state_std
    interpolant_c = (interpolant - state_mean) / state_std
    x = jnp.concatenate([t_, state_c, interpolant_c], axis=-1)
    for i, (W, b) in enumerate(params):
        x = x @ W + b
        if i < len(params) - 1:
            x = jnp.maximum(x, 0.0)
    return jnp.squeeze(x)


if __name__ == "__main__":
    key = jax.random.PRNGKey(0)

    dimension_state = 4          # d
    hidden_layers = [32, 32]     # config['layers']
    N = 8                        # batch

    k_params, k_int, k_state, k_t = jax.random.split(key, 4)
    params = init_b_network_params(k_params, dimension_state, hidden_layers)

    # config['standardization'] (deterministic, in-script)
    state_mean = jnp.full((dimension_state,), 0.5, dtype=jnp.float32)
    state_std = jnp.full((dimension_state,), 2.0, dtype=jnp.float32)

    interpolant = jax.random.normal(k_int, (N, dimension_state), dtype=jnp.float32)
    state = jax.random.normal(k_state, (N, dimension_state), dtype=jnp.float32)
    t_scalar = jax.random.uniform(k_t, (), dtype=jnp.float32)       # scalar time
    t_col = jnp.linspace(0.1, 0.9, N, dtype=jnp.float32)[:, None]   # (N, 1) time

    # scalar-t path
    out = jax.block_until_ready(
        b_network_forward(interpolant, state, t_scalar, params, state_mean, state_std))
    ref = b_network_reference(interpolant, state, t_scalar, params, state_mean, state_std)
    assert out.shape == (N, dimension_state)
    assert jnp.allclose(out, ref, atol=1e-5, rtol=1e-4), float(jnp.max(jnp.abs(out - ref)))

    # (N, 1)-t path
    out2 = jax.block_until_ready(
        b_network_forward(interpolant, state, t_col, params, state_mean, state_std))
    ref2 = b_network_reference(interpolant, state, t_col, params, state_mean, state_std)
    assert out2.shape == (N, dimension_state)
    assert jnp.allclose(out2, ref2, atol=1e-5, rtol=1e-4), float(jnp.max(jnp.abs(out2 - ref2)))

    print("KERNEL_OK")
</pallas_src>

<mosaic_0001>
module attributes {stable_mosaic.version = 11 : i64} {
  func.func @kernel(%arg0: i32, %arg1: memref<8x1xf32, #tpu.memory_space<vmem>>, %arg2: memref<8x4xf32, #tpu.memory_space<vmem>>, %arg3: memref<8x4xf32, #tpu.memory_space<vmem>>, %arg4: memref<1x128xf32, #tpu.memory_space<vmem>>, %arg5: memref<4x128xf32, #tpu.memory_space<vmem>>, %arg6: memref<4x128xf32, #tpu.memory_space<vmem>>, %arg7: memref<1x128xf32, #tpu.memory_space<vmem>>, %arg8: memref<128x128xf32, #tpu.memory_space<vmem>>, %arg9: memref<1x128xf32, #tpu.memory_space<vmem>>, %arg10: memref<128x128xf32, #tpu.memory_space<vmem>>, %arg11: memref<1x128xf32, #tpu.memory_space<vmem>>, %arg12: memref<8x128xf32, #tpu.memory_space<vmem>>) attributes {dimension_semantics = [#tpu.dimension_semantics<parallel>], iteration_bounds = array<i64: 1>, scalar_prefetch = 0 : i64, scratch_operands = 0 : i64, tpu.core_type = #tpu.core_type<tc>, window_params = [{transform_indices = @transform_0, window_bounds = array<i64: 8, 1>}, {transform_indices = @transform_1, window_bounds = array<i64: 8, 4>}, {transform_indices = @transform_2, window_bounds = array<i64: 8, 4>}, {pipeline_mode = #tpu.pipeline_mode<synchronous>, transform_indices = @transform_3, window_bounds = array<i64: 1, 128>}, {pipeline_mode = #tpu.pipeline_mode<synchronous>, transform_indices = @transform_4, window_bounds = array<i64: 4, 128>}, {pipeline_mode = #tpu.pipeline_mode<synchronous>, transform_indices = @transform_5, window_bounds = array<i64: 4, 128>}, {pipeline_mode = #tpu.pipeline_mode<synchronous>, transform_indices = @transform_6, window_bounds = array<i64: 1, 128>}, {pipeline_mode = #tpu.pipeline_mode<synchronous>, transform_indices = @transform_7, window_bounds = array<i64: 128, 128>}, {pipeline_mode = #tpu.pipeline_mode<synchronous>, transform_indices = @transform_8, window_bounds = array<i64: 1, 128>}, {pipeline_mode = #tpu.pipeline_mode<synchronous>, transform_indices = @transform_9, window_bounds = array<i64: 128, 128>}, {pipeline_mode = #tpu.pipeline_mode<synchronous>, transform_indices = @transform_10, window_bounds = array<i64: 1, 128>}, {transform_indices = @transform_11, window_bounds = array<i64: 8, 128>}]} {
    %c0 = arith.constant 0 : index
    %c0_0 = arith.constant 0 : index
    %0 = vector.load %arg2[%c0, %c0_0] : memref<8x4xf32, #tpu.memory_space<vmem>>, vector<8x4xf32>
    %c0_1 = arith.constant 0 : index
    %c0_2 = arith.constant 0 : index
    %1 = vector.load %arg5[%c0_1, %c0_2] : memref<4x128xf32, #tpu.memory_space<vmem>>, vector<4x128xf32>
    %cst = arith.constant dense<0.000000e+00> : vector<8x128xf32>
    %2 = tpu.matmul %0, %1, %cst {dimension_numbers = #tpu.dot_dimension_numbers<[1], [0], [0], [1], [0, 0, 1, 1], [], []>} : vector<8x4xf32>, vector<4x128xf32>, vector<8x128xf32> -> vector<8x128xf32>
    %c0_3 = arith.constant 0 : index
    %c0_4 = arith.constant 0 : index
    %3 = vector.load %arg3[%c0_3, %c0_4] : memref<8x4xf32, #tpu.memory_space<vmem>>, vector<8x4xf32>
    %c0_5 = arith.constant 0 : index
    %c0_6 = arith.constant 0 : index
    %4 = vector.load %arg6[%c0_5, %c0_6] : memref<4x128xf32, #tpu.memory_space<vmem>>, vector<4x128xf32>
    %cst_7 = arith.constant dense<0.000000e+00> : vector<8x128xf32>
    %5 = tpu.matmul %3, %4, %cst_7 {dimension_numbers = #tpu.dot_dimension_numbers<[1], [0], [0], [1], [0, 0, 1, 1], [], []>} : vector<8x4xf32>, vector<4x128xf32>, vector<8x128xf32> -> vector<8x128xf32>
    %6 = arith.addf %2, %5 : vector<8x128xf32>
    %c0_8 = arith.constant 0 : index
    %c0_9 = arith.constant 0 : index
    %7 = vector.load %arg1[%c0_8, %c0_9] : memref<8x1xf32, #tpu.memory_space<vmem>>, vector<8x1xf32>
    %c0_10 = arith.constant 0 : index
    %c0_11 = arith.constant 0 : index
    %8 = vector.load %arg4[%c0_10, %c0_11] : memref<1x128xf32, #tpu.memory_space<vmem>>, vector<1x128xf32>
    %9 = vector.broadcast %7 : vector<8x1xf32> to vector<8x128xf32>
    %10 = vector.broadcast %8 : vector<1x128xf32> to vector<8x128xf32>
    %11 = arith.mulf %9, %10 : vector<8x128xf32>
    %12 = arith.addf %6, %11 : vector<8x128xf32>
    %c0_12 = arith.constant 0 : index
    %c0_13 = arith.constant 0 : index
    %13 = vector.load %arg7[%c0_12, %c0_13] : memref<1x128xf32, #tpu.memory_space<vmem>>, vector<1x128xf32>
    %14 = vector.broadcast %13 : vector<1x128xf32> to vector<8x128xf32>
    %15 = arith.addf %12, %14 : vector<8x128xf32>
    %cst_14 = arith.constant 0.000000e+00 : f32
    %16 = vector.broadcast %cst_14 : f32 to vector<8x128xf32>
    %17 = arith.maximumf %15, %16 : vector<8x128xf32>
    %c0_15 = arith.constant 0 : index
    %c0_16 = arith.constant 0 : index
    %18 = vector.load %arg8[%c0_15, %c0_16] : memref<128x128xf32, #tpu.memory_space<vmem>>, vector<128x128xf32>
    %c0_17 = arith.constant 0 : index
    %c0_18 = arith.constant 0 : index
    %19 = vector.load %arg9[%c0_17, %c0_18] : memref<1x128xf32, #tpu.memory_space<vmem>>, vector<1x128xf32>
    %cst_19 = arith.constant dense<0.000000e+00> : vector<8x128xf32>
    %20 = tpu.matmul %17, %18, %cst_19 {dimension_numbers = #tpu.dot_dimension_numbers<[1], [0], [0], [1], [0, 0, 1, 1], [], []>} : vector<8x128xf32>, vector<128x128xf32>, vector<8x128xf32> -> vector<8x128xf32>
    %21 = vector.broadcast %19 : vector<1x128xf32> to vector<8x128xf32>
    %22 = arith.addf %20, %21 : vector<8x128xf32>
    %cst_20 = arith.constant 0.000000e+00 : f32
    %23 = vector.broadcast %cst_20 : f32 to vector<8x128xf32>
    %24 = arith.maximumf %22, %23 : vector<8x128xf32>
    %c0_21 = arith.constant 0 : index
    %c0_22 = arith.constant 0 : index
    %25 = vector.load %arg10[%c0_21, %c0_22] : memref<128x128xf32, #tpu.memory_space<vmem>>, vector<128x128xf32>
    %c0_23 = arith.constant 0 : index
    %c0_24 = arith.constant 0 : index
    %26 = vector.load %arg11[%c0_23, %c0_24] : memref<1x128xf32, #tpu.memory_space<vmem>>, vector<1x128xf32>
    %cst_25 = arith.constant dense<0.000000e+00> : vector<8x128xf32>
    %27 = tpu.matmul %24, %25, %cst_25 {dimension_numbers = #tpu.dot_dimension_numbers<[1], [0], [0], [1], [0, 0, 1, 1], [], []>} : vector<8x128xf32>, vector<128x128xf32>, vector<8x128xf32> -> vector<8x128xf32>
    %28 = vector.broadcast %26 : vector<1x128xf32> to vector<8x128xf32>
    %29 = arith.addf %27, %28 : vector<8x128xf32>
    %c0_26 = arith.constant 0 : index
    %c0_27 = arith.constant 0 : index
    %30 = vector.load %arg12[%c0_26, %c0_27] : memref<8x128xf32, #tpu.memory_space<vmem>>, vector<8x128xf32>
    tpu.vector_store %arg12[%c0_26, %c0_27], %29 {strides = array<i32>} : memref<8x128xf32, #tpu.memory_space<vmem>>, vector<8x128xf32>,
    return
  }
  func.func @transform_0(%arg0: i32) -> (i32, i32) {
    %c0_i32 = arith.constant 0 : i32
    %c0_i32_0 = arith.constant 0 : i32
    return %arg0, %c0_i32 : i32, i32
  }
  func.func @transform_1(%arg0: i32) -> (i32, i32) {
    %c0_i32 = arith.constant 0 : i32
    %c0_i32_0 = arith.constant 0 : i32
    return %arg0, %c0_i32 : i32, i32
  }
  func.func @transform_2(%arg0: i32) -> (i32, i32) {
    %c0_i32 = arith.constant 0 : i32
    %c0_i32_0 = arith.constant 0 : i32
    return %arg0, %c0_i32 : i32, i32
  }
  func.func @transform_3(%arg0: i32) -> (i32, i32) {
    %c0_i32 = arith.constant 0 : i32
    %c0_i32_0 = arith.constant 0 : i32
    %c0_i32_1 = arith.constant 0 : i32
    return %c0_i32, %c0_i32_0 : i32, i32
  }
  func.func @transform_4(%arg0: i32) -> (i32, i32) {
    %c0_i32 = arith.constant 0 : i32
    %c0_i32_0 = arith.constant 0 : i32
    %c0_i32_1 = arith.constant 0 : i32
    return %c0_i32, %c0_i32_0 : i32, i32
  }
  func.func @transform_5(%arg0: i32) -> (i32, i32) {
    %c0_i32 = arith.constant 0 : i32
    %c0_i32_0 = arith.constant 0 : i32
    %c0_i32_1 = arith.constant 0 : i32
    return %c0_i32, %c0_i32_0 : i32, i32
  }
  func.func @transform_6(%arg0: i32) -> (i32, i32) {
    %c0_i32 = arith.constant 0 : i32
    %c0_i32_0 = arith.constant 0 : i32
    %c0_i32_1 = arith.constant 0 : i32
    return %c0_i32, %c0_i32_0 : i32, i32
  }
  func.func @transform_7(%arg0: i32) -> (i32, i32) {
    %c0_i32 = arith.constant 0 : i32
    %c0_i32_0 = arith.constant 0 : i32
    %c0_i32_1 = arith.constant 0 : i32
    return %c0_i32, %c0_i32_0 : i32, i32
  }
  func.func @transform_8(%arg0: i32) -> (i32, i32) {
    %c0_i32 = arith.constant 0 : i32
    %c0_i32_0 = arith.constant 0 : i32
    %c0_i32_1 = arith.constant 0 : i32
    return %c0_i32, %c0_i32_0 : i32, i32
  }
  func.func @transform_9(%arg0: i32) -> (i32, i32) {
    %c0_i32 = arith.constant 0 : i32
    %c0_i32_0 = arith.constant 0 : i32
    %c0_i32_1 = arith.constant 0 : i32
    return %c0_i32, %c0_i32_0 : i32, i32
  }
  func.func @transform_10(%arg0: i32) -> (i32, i32) {
    %c0_i32 = arith.constant 0 : i32
    %c0_i32_0 = arith.constant 0 : i32
    %c0_i32_1 = arith.constant 0 : i32
    return %c0_i32, %c0_i32_0 : i32, i32
  }
  func.func @transform_11(%arg0: i32) -> (i32, i32) {
    %c0_i32 = arith.constant 0 : i32
    %c0_i32_0 = arith.constant 0 : i32
    return %arg0, %c0_i32 : i32, i32
  }
}

</mosaic_0001>

<llo_original>
// kernel: _b_network_impl.1
$region0: #{_b_network_impl.1}
  #allocation0 [shape = 'u32[]', space=smem, size = 0x4, offset = 0x4, fixed_abs, tag = 'smem constant byte address 0x4 - core index']
  #allocation1 [shape = 'u32[144,128]{1,0:T(1,128)}', space=vmem, size = 0x12000, scoped, tag = 'internal scratch']
  %s0 = inlined_call_operand.hbm [shape: f32[8,1], index: 0, kind: input, shape index: {}]
  %s1 = inlined_call_operand.hbm [shape: f32[8,4], index: 1, kind: input, shape index: {}]
  %s2 = inlined_call_operand.hbm [shape: f32[8,4], index: 2, kind: input, shape index: {}]
  %s3 = inlined_call_operand.hbm [shape: f32[1,128], index: 3, kind: input, shape index: {}]
  %s4 = inlined_call_operand.hbm [shape: f32[4,128], index: 4, kind: input, shape index: {}]
  %s5 = inlined_call_operand.hbm [shape: f32[4,128], index: 5, kind: input, shape index: {}]
  %s6 = inlined_call_operand.hbm [shape: f32[1,128], index: 6, kind: input, shape index: {}]
  %s7 = inlined_call_operand.hbm [shape: f32[128,128], index: 7, kind: input, shape index: {}]
  %s8 = inlined_call_operand.hbm [shape: f32[1,128], index: 8, kind: input, shape index: {}]
  %s9 = inlined_call_operand.hbm [shape: f32[128,128], index: 9, kind: input, shape index: {}]
  %s10 = inlined_call_operand.hbm [shape: f32[1,128], index: 10, kind: input, shape index: {}]
  %s11 = inlined_call_operand.hbm [shape: f32[8,128], index: 11, kind: output, shape index: {}]
  %s12 = sld [smem:[#allocation0]]
  $region98: #{_b_network_impl.1} parent=0
    _
  %s14 = ssub.s32 1, %s12
  %s15 = scalar_select 0, %s14, %s12
  $region1: #{_b_network_impl.1} parent=0
    #allocation2 [shape = 'u8[4096]{0}', space=vmem, size = 0x1000, scoped, tag = 'input window, operand 0, single buffered']
    #allocation3 [shape = 's32[1]{0}', space=sflag, size = 0x4, scoped, tag = 'scoped memory for _b_network_impl.1']
    #allocation4 [shape = 's32[1]{0}', space=sflag, size = 0x4, scoped, tag = 'scoped memory for _b_network_impl.1']
    #allocation5 [shape = 'u8[4096]{0}', space=vmem, size = 0x1000, scoped, tag = 'input window, operand 1, single buffered']
    #allocation6 [shape = 's32[1]{0}', space=sflag, size = 0x4, scoped, tag = 'scoped memory for _b_network_impl.1']
    #allocation7 [shape = 'u8[4096]{0}', space=vmem, size = 0x1000, scoped, tag = 'input window, operand 2, single buffered']
    #allocation8 [shape = 'u8[512]{0}', space=vmem, size = 0x400, scoped, tag = 'input window, operand 3, single buffered']
    #allocation9 [shape = 's32[1]{0}', space=sflag, size = 0x4, scoped, tag = 'scoped memory for _b_network_impl.1']
    #allocation10 [shape = 'u8[2048]{0}', space=vmem, size = 0x800, scoped, tag = 'input window, operand 4, single buffered']
    #allocation11 [shape = 'u8[2048]{0}', space=vmem, size = 0x800, scoped, tag = 'input window, operand 5, single buffered']
    #allocation12 [shape = 's32[1]{0}', space=sflag, size = 0x4, scoped, tag = 'scoped memory for _b_network_impl.1']
    #allocation13 [shape = 'u8[512]{0}', space=vmem, size = 0x400, scoped, tag = 'input window, operand 6, single buffered']
    #allocation14 [shape = 'u8[65536]{0}', space=vmem, size = 0x10000, scoped, tag = 'input window, operand 7, single buffered']
    #allocation15 [shape = 's32[1]{0}', space=sflag, size = 0x4, scoped, tag = 'scoped memory for _b_network_impl.1']
    #allocation16 [shape = 'u8[512]{0}', space=vmem, size = 0x400, scoped, tag = 'input window, operand 8, single buffered']
    #allocation17 [shape = 'u8[65536]{0}', space=vmem, size = 0x10000, scoped, tag = 'input window, operand 9, single buffered']
    #allocation18 [shape = 's32[1]{0}', space=sflag, size = 0x4, scoped, tag = 'scoped memory for _b_network_impl.1']
    #allocation19 [shape = 'u8[512]{0}', space=vmem, size = 0x400, scoped, tag = 'input window, operand 10, single buffered']
    #allocation20 [shape = 'u8[4096]{0}', space=vmem, size = 0x1000, scoped, tag = 'output window, operand 0, single buffered']
    %16 = vsyncpa [#allocation3], 0
    %17 = vsyncpa [#allocation6], 0
    %18 = vsyncpa [#allocation9], 0
    %19 = vsyncpa [#allocation12], 0
    %20 = vsyncpa [#allocation15], 0
    %21 = vsyncpa [#allocation18], 0
    %22 = vsyncpa [#allocation4], 0
    // Predicated region
    $region2: #{_b_network_impl.1} parent=1 // pred_check
      _
    $region3: #{_b_network_impl.1} parent=1 // pred_check_branch
      %24 = sbr.rel (0) target = $region5
    $region4: #{_b_network_impl.1} parent=1 // pred_region
      %s26 = ssub.s32 128, 128
      %27 = vsyncadd [#allocation3], %s26
      %s29 = sshll.u32 [#allocation2], 4
      %s30 = int_to_ptr.vmem [resolvable:$true] %s29
      %32 = dma.hbm_to_vmem [thread:$0]  %s0, 128, %s30, [#allocation3]
    $region5: #{_b_network_impl.1} parent=1 // pred_fallthru
      _
    // Predicated region
    $region6: #{_b_network_impl.1} parent=1 // pred_check
      _
    $region7: #{_b_network_impl.1} parent=1 // pred_check_branch
      %34 = sbr.rel (0) target = $region9
    $region8: #{_b_network_impl.1} parent=1 // pred_region
      %s36 = ssub.s32 128, 128
      %37 = vsyncadd [#allocation6], %s36
      %s39 = sshll.u32 [#allocation5], 4
      %s40 = int_to_ptr.vmem [resolvable:$true] %s39
      %42 = dma.hbm_to_vmem [thread:$0]  %s1, 128, %s40, [#allocation6]
    $region9: #{_b_network_impl.1} parent=1 // pred_fallthru
      _
    // Predicated region
    $region10: #{_b_network_impl.1} parent=1 // pred_check
      _
    $region11: #{_b_network_impl.1} parent=1 // pred_check_branch
      %44 = sbr.rel (0) target = $region13
    $region12: #{_b_network_impl.1} parent=1 // pred_region
      %s46 = ssub.s32 128, 128
      %47 = vsyncadd [#allocation6], %s46
      %s49 = sshll.u32 [#allocation7], 4
      %s50 = int_to_ptr.vmem [resolvable:$true] %s49
      %52 = dma.hbm_to_vmem [thread:$0]  %s2, 128, %s50, [#allocation6]
    $region13: #{_b_network_impl.1} parent=1 // pred_fallthru
      _
    // Predicated region
    $region14: #{_b_network_impl.1} parent=1 // pred_check
      _
    $region15: #{_b_network_impl.1} parent=1 // pred_check_branch
      %54 = sbr.rel (0) target = $region17
    $region16: #{_b_network_impl.1} parent=1 // pred_region
      %s56 = ssub.s32 16, 16
      %57 = vsyncadd [#allocation9], %s56
      %s59 = sshll.u32 [#allocation8], 4
      %s60 = int_to_ptr.vmem [resolvable:$true] %s59
      %62 = dma.hbm_to_vmem [thread:$0]  %s3, 16, %s60, [#allocation9]
    $region17: #{_b_network_impl.1} parent=1 // pred_fallthru
      _
    // Predicated region
    $region18: #{_b_network_impl.1} parent=1 // pred_check
      _
    $region19: #{_b_network_impl.1} parent=1 // pred_check_branch
      %64 = sbr.rel (0) target = $region21
    $region20: #{_b_network_impl.1} parent=1 // pred_region
      %s66 = ssub.s32 64, 64
      %67 = vsyncadd [#allocation9], %s66
      %s69 = sshll.u32 [#allocation10], 4
      %s70 = int_to_ptr.vmem [resolvable:$true] %s69
      %72 = dma.hbm_to_vmem [thread:$0]  %s4, 64, %s70, [#allocation9]
    $region21: #{_b_network_impl.1} parent=1 // pred_fallthru
      _
    // Predicated region
    $region22: #{_b_network_impl.1} parent=1 // pred_check
      _
    $region23: #{_b_network_impl.1} parent=1 // pred_check_branch
      %74 = sbr.rel (0) target = $region25
    $region24: #{_b_network_impl.1} parent=1 // pred_region
      %s76 = ssub.s32 64, 64
      %77 = vsyncadd [#allocation12], %s76
      %s79 = sshll.u32 [#allocation11], 4
      %s80 = int_to_ptr.vmem [resolvable:$true] %s79
      %82 = dma.hbm_to_vmem [thread:$0]  %s5, 64, %s80, [#allocation12]
    $region25: #{_b_network_impl.1} parent=1 // pred_fallthru
      _
    // Predicated region
    $region26: #{_b_network_impl.1} parent=1 // pred_check
      _
    $region27: #{_b_network_impl.1} parent=1 // pred_check_branch
      %84 = sbr.rel (0) target = $region29
    $region28: #{_b_network_impl.1} parent=1 // pred_region
      %s86 = ssub.s32 16, 16
      %87 = vsyncadd [#allocation12], %s86
      %s89 = sshll.u32 [#allocation13], 4
      %s90 = int_to_ptr.vmem [resolvable:$true] %s89
      %92 = dma.hbm_to_vmem [thread:$0]  %s6, 16, %s90, [#allocation12]
    $region29: #{_b_network_impl.1} parent=1 // pred_fallthru
      _
    // Predicated region
    $region30: #{_b_network_impl.1} parent=1 // pred_check
      _
    $region31: #{_b_network_impl.1} parent=1 // pred_check_branch
      %94 = sbr.rel (0) target = $region33
    $region32: #{_b_network_impl.1} parent=1 // pred_region
      %s96 = ssub.s32 2048, 2048
      %97 = vsyncadd [#allocation15], %s96
      %s98 = sshll.u32 [#allocation14], 4
      %s99 = int_to_ptr.vmem [resolvable:$true] %s98
      %104 = dma.hbm_to_vmem [thread:$0]  %s7, 2048, %s99, [#allocation15], 128, 128, 8
    $region33: #{_b_network_impl.1} parent=1 // pred_fallthru
      _
    // Predicated region
    $region34: #{_b_network_impl.1} parent=1 // pred_check
      _
    $region35: #{_b_network_impl.1} parent=1 // pred_check_branch
      %106 = sbr.rel (0) target = $region37
    $region36: #{_b_network_impl.1} parent=1 // pred_region
      %s108 = ssub.s32 16, 16
      %109 = vsyncadd [#allocation15], %s108
      %s111 = sshll.u32 [#allocation16], 4
      %s112 = int_to_ptr.vmem [resolvable:$true] %s111
      %114 = dma.hbm_to_vmem [thread:$0]  %s8, 16, %s112, [#allocation15]
    $region37: #{_b_network_impl.1} parent=1 // pred_fallthru
      _
    // Predicated region
    $region38: #{_b_network_impl.1} parent=1 // pred_check
      _
    $region39: #{_b_network_impl.1} parent=1 // pred_check_branch
      %116 = sbr.rel (0) target = $region41
    $region40: #{_b_network_impl.1} parent=1 // pred_region
      %s118 = ssub.s32 2048, 2048
      %119 = vsyncadd [#allocation18], %s118
      %s120 = sshll.u32 [#allocation17], 4
      %s121 = int_to_ptr.vmem [resolvable:$true] %s120
      %126 = dma.hbm_to_vmem [thread:$0]  %s9, 2048, %s121, [#allocation18], 128, 128, 8
    $region41: #{_b_network_impl.1} parent=1 // pred_fallthru
      _
    // Predicated region
    $region42: #{_b_network_impl.1} parent=1 // pred_check
      _
    $region43: #{_b_network_impl.1} parent=1 // pred_check_branch
      %128 = sbr.rel (0) target = $region45
    $region44: #{_b_network_impl.1} parent=1 // pred_region
      %s130 = ssub.s32 16, 16
      %131 = vsyncadd [#allocation18], %s130
      %s133 = sshll.u32 [#allocation19], 4
      %s134 = int_to_ptr.vmem [resolvable:$true] %s133
      %136 = dma.hbm_to_vmem [thread:$0]  %s10, 16, %s134, [#allocation18]
    $region45: #{_b_network_impl.1} parent=1 // pred_fallthru
      _
    // Predicated region
    $region46: #{_b_network_impl.1} parent=1 // pred_check
      _
    $region47: #{_b_network_impl.1} parent=1 // pred_check_branch
      %138 = sbr.rel (0) target = $region49
    $region48: #{_b_network_impl.1} parent=1 // pred_region
      %139 = dma.done [#allocation3], 128
    $region49: #{_b_network_impl.1} parent=1 // pred_fallthru
      _
    // Predicated region
    $region50: #{_b_network_impl.1} parent=1 // pred_check
      _
    $region51: #{_b_network_impl.1} parent=1 // pred_check_branch
      %141 = sbr.rel (0) target = $region53
    $region52: #{_b_network_impl.1} parent=1 // pred_region
      %142 = dma.done [#allocation6], 128
    $region53: #{_b_network_impl.1} parent=1 // pred_fallthru
      _
    // Predicated region
    $region54: #{_b_network_impl.1} parent=1 // pred_check
      _
    $region55: #{_b_network_impl.1} parent=1 // pred_check_branch
      %144 = sbr.rel (0) target = $region57
    $region56: #{_b_network_impl.1} parent=1 // pred_region
      %145 = dma.done [#allocation6], 128
    $region57: #{_b_network_impl.1} parent=1 // pred_fallthru
      _
    // Predicated region
    $region58: #{_b_network_impl.1} parent=1 // pred_check
      _
    $region59: #{_b_network_impl.1} parent=1 // pred_check_branch
      %147 = sbr.rel (0) target = $region61
    $region60: #{_b_network_impl.1} parent=1 // pred_region
      %148 = dma.done [#allocation9], 16
    $region61: #{_b_network_impl.1} parent=1 // pred_fallthru
      _
    // Predicated region
    $region62: #{_b_network_impl.1} parent=1 // pred_check
      _
    $region63: #{_b_network_impl.1} parent=1 // pred_check_branch
      %150 = sbr.rel (0) target = $region65
    $region64: #{_b_network_impl.1} parent=1 // pred_region
      %151 = dma.done [#allocation9], 64
    $region65: #{_b_network_impl.1} parent=1 // pred_fallthru
      _
    // Predicated region
    $region66: #{_b_network_impl.1} parent=1 // pred_check
      _
    $region67: #{_b_network_impl.1} parent=1 // pred_check_branch
      %153 = sbr.rel (0) target = $region69
    $region68: #{_b_network_impl.1} parent=1 // pred_region
      %154 = dma.done [#allocation12], 64
    $region69: #{_b_network_impl.1} parent=1 // pred_fallthru
      _
    // Predicated region
    $region70: #{_b_network_impl.1} parent=1 // pred_check
      _
    $region71: #{_b_network_impl.1} parent=1 // pred_check_branch
      %156 = sbr.rel (0) target = $region73
    $region72: #{_b_network_impl.1} parent=1 // pred_region
      %157 = dma.done [#allocation12], 16
    $region73: #{_b_network_impl.1} parent=1 // pred_fallthru
      _
    // Predicated region
    $region74: #{_b_network_impl.1} parent=1 // pred_check
      _
    $region75: #{_b_network_impl.1} parent=1 // pred_check_branch
      %159 = sbr.rel (0) target = $region77
    $region76: #{_b_network_impl.1} parent=1 // pred_region
      %160 = dma.done [#allocation15], 2048
    $region77: #{_b_network_impl.1} parent=1 // pred_fallthru
      _
    // Predicated region
    $region78: #{_b_network_impl.1} parent=1 // pred_check
      _
    $region79: #{_b_network_impl.1} parent=1 // pred_check_branch
      %162 = sbr.rel (0) target = $region81
    $region80: #{_b_network_impl.1} parent=1 // pred_region
      %163 = dma.done [#allocation15], 16
    $region81: #{_b_network_impl.1} parent=1 // pred_fallthru
      _
    // Predicated region
    $region82: #{_b_network_impl.1} parent=1 // pred_check
      _
    $region83: #{_b_network_impl.1} parent=1 // pred_check_branch
      %165 = sbr.rel (0) target = $region85
    $region84: #{_b_network_impl.1} parent=1 // pred_region
      %166 = dma.done [#allocation18], 2048
    $region85: #{_b_network_impl.1} parent=1 // pred_fallthru
      _
    // Predicated region
    $region86: #{_b_network_impl.1} parent=1 // pred_check
      _
    $region87: #{_b_network_impl.1} parent=1 // pred_check_branch
      %168 = sbr.rel (0) target = $region89
    $region88: #{_b_network_impl.1} parent=1 // pred_region
      %169 = dma.done [#allocation18], 16
    $region89: #{_b_network_impl.1} parent=1 // pred_fallthru
      _
    %v170 = vld [vmem:[#allocation5] sm:$0xff]
    %v171 = vld [vmem:[#allocation10] sm:$0xf]
    %v172 = vld [vmem:[#allocation7] sm:$0xff]
    %v173 = vld [vmem:[#allocation11] sm:$0xf]
    %vm174 = vcmask 31744
    %v176 = vsel %vm174, %v172, 0
    %vm178 = vcmask 1043456
    %v180 = vsel %vm178, %v173, 0
    %182 = vmatprep.subr.mxu0 0.0
    %183 = vmatpush1.msra.mxu0 %v180
    %184 = vmatprep.subr.mxu0 0.0
    %185 = vmatpush1.msra.mxu0 0.0
    %186 = vmatprep.subr.mxu0 0.0
    %187 = vmatpush1.msra.mxu0 0.0
    %188 = vmatprep.subr.mxu0 0.0
    %189 = vmatpush1.msra.mxu0 0.0
    %190 = vmatprep.subr.mxu0 0.0
    %191 = vmatpush1.msra.mxu0 0.0
    %192 = vmatprep.subr.mxu0 0.0
    %193 = vmatpush1.msra.mxu0 0.0
    %194 = vmatprep.subr.mxu0 0.0
    %195 = vmatpush1.msra.mxu0 0.0
    %196 = vmatprep.subr.mxu0 0.0
    %197 = vmatpush1.msra.mxu0 0.0
    %198 = vmatprep.subr.mxu0 0.0
    %199 = vmatpush1.msra.mxu0 0.0
    %200 = vmatprep.subr.mxu0 0.0
    %201 = vmatpush1.msra.mxu0 0.0
    %202 = vmatprep.subr.mxu0 0.0
    %203 = vmatpush1.msra.mxu0 0.0
    %204 = vmatprep.subr.mxu0 0.0
    %205 = vmatpush1.msra.mxu0 0.0
    %206 = vmatprep.subr.mxu0 0.0
    %207 = vmatpush1.msra.mxu0 0.0
    %208 = vmatprep.subr.mxu0 0.0
    %209 = vmatpush1.msra.mxu0 0.0
    %210 = vmatprep.subr.mxu0 0.0
    %211 = vmatpush1.msra.mxu0 0.0
    %212 = vmatprep.subr.mxu0 0.0
    %213 = vmatpush1.msra.mxu0 0.0
    %214 = vmatprep.subr.mxu0 0.0
    %215 = vmatpush1.msra.mxu0 0.0
    %216 = vmatprep.subr.mxu0 0.0
    %217 = vmatpush1.msra.mxu0 0.0
    %218 = vmatprep.subr.mxu0 0.0
    %219 = vmatpush1.msra.mxu0 0.0
    %220 = vmatprep.subr.mxu0 0.0
    %221 = vmatpush1.msra.mxu0 0.0
    %222 = vmatprep.subr.mxu0 0.0
    %223 = vmatpush1.msra.mxu0 0.0
    %224 = vmatprep.subr.mxu0 0.0
    %225 = vmatpush1.msra.mxu0 0.0
    %226 = vmatprep.subr.mxu0 0.0
    %227 = vmatpush1.msra.mxu0 0.0
    %228 = vmatprep.subr.mxu0 0.0
    %229 = vmatpush1.msra.mxu0 0.0
    %230 = vmatprep.subr.mxu0 0.0
    %231 = vmatpush1.msra.mxu0 0.0
    %232 = vmatprep.subr.mxu0 0.0
    %233 = vmatpush1.msra.mxu0 0.0
    %234 = vmatprep.subr.mxu0 0.0
    %235 = vmatpush1.msra.mxu0 0.0
    %236 = vmatprep.subr.mxu0 0.0
    %237 = vmatpush1.msra.mxu0 0.0
    %238 = vmatprep.subr.mxu0 0.0
    %239 = vmatpush1.msra.mxu0 0.0
    %240 = vmatprep.subr.mxu0 0.0
    %241 = vmatpush1.msra.mxu0 0.0
    %242 = vmatprep.subr.mxu0 0.0
    %243 = vmatpush1.msra.mxu0 0.0
    %244 = vmatprep.subr.mxu0 0.0
    %245 = vmatpush1.msra.mxu0 0.0
    %246 = vmatprep.mubr.f32.mxu0 0.0
    %247 = vmatmul.mubr.f32.gmra.mrb[0].mxu0 %v176
    %v248 = vpop.f32.mrb[0].mxu0
    %v249 = vadd.f32 0.0, %v248
    %v250 = vpop.f32.mrb[0].mxu0
    %251 = vdwg.mxu0
    %v253 = vsel %vm174, %v170, 0
    %v256 = vsel %vm178, %v171, 0
    %258 = vmatprep.subr.mxu0 0.0
    %259 = vmatpush1.msra.mxu0 %v256
    %260 = vmatprep.subr.mxu0 0.0
    %261 = vmatpush1.msra.mxu0 0.0
    %262 = vmatprep.subr.mxu0 0.0
    %263 = vmatpush1.msra.mxu0 0.0
    %264 = vmatprep.subr.mxu0 0.0
    %265 = vmatpush1.msra.mxu0 0.0
    %266 = vmatprep.subr.mxu0 0.0
    %267 = vmatpush1.msra.mxu0 0.0
    %268 = vmatprep.subr.mxu0 0.0
    %269 = vmatpush1.msra.mxu0 0.0
    %270 = vmatprep.subr.mxu0 0.0
    %271 = vmatpush1.msra.mxu0 0.0
    %272 = vmatprep.subr.mxu0 0.0
    %273 = vmatpush1.msra.mxu0 0.0
    %274 = vmatprep.subr.mxu0 0.0
    %275 = vmatpush1.msra.mxu0 0.0
    %276 = vmatprep.subr.mxu0 0.0
    %277 = vmatpush1.msra.mxu0 0.0
    %278 = vmatprep.subr.mxu0 0.0
    %279 = vmatpush1.msra.mxu0 0.0
    %280 = vmatprep.subr.mxu0 0.0
    %281 = vmatpush1.msra.mxu0 0.0
    %282 = vmatprep.subr.mxu0 0.0
    %283 = vmatpush1.msra.mxu0 0.0
    %284 = vmatprep.subr.mxu0 0.0
    %285 = vmatpush1.msra.mxu0 0.0
    %286 = vmatprep.subr.mxu0 0.0
    %287 = vmatpush1.msra.mxu0 0.0
    %288 = vmatprep.subr.mxu0 0.0
    %289 = vmatpush1.msra.mxu0 0.0
    %290 = vmatprep.subr.mxu0 0.0
    %291 = vmatpush1.msra.mxu0 0.0
    %292 = vmatprep.subr.mxu0 0.0
    %293 = vmatpush1.msra.mxu0 0.0
    %294 = vmatprep.subr.mxu0 0.0
    %295 = vmatpush1.msra.mxu0 0.0
    %296 = vmatprep.subr.mxu0 0.0
    %297 = vmatpush1.msra.mxu0 0.0
    %298 = vmatprep.subr.mxu0 0.0
    %299 = vmatpush1.msra.mxu0 0.0
    %300 = vmatprep.subr.mxu0 0.0
    %301 = vmatpush1.msra.mxu0 0.0
    %302 = vmatprep.subr.mxu0 0.0
    %303 = vmatpush1.msra.mxu0 0.0
    %304 = vmatprep.subr.mxu0 0.0
    %305 = vmatpush1.msra.mxu0 0.0
    %306 = vmatprep.subr.mxu0 0.0
    %307 = vmatpush1.msra.mxu0 0.0
    %308 = vmatprep.subr.mxu0 0.0
    %309 = vmatpush1.msra.mxu0 0.0
    %310 = vmatprep.subr.mxu0 0.0
    %311 = vmatpush1.msra.mxu0 0.0
    %312 = vmatprep.subr.mxu0 0.0
    %313 = vmatpush1.msra.mxu0 0.0
    %314 = vmatprep.subr.mxu0 0.0
    %315 = vmatpush1.msra.mxu0 0.0
    %316 = vmatprep.subr.mxu0 0.0
    %317 = vmatpush1.msra.mxu0 0.0
    %318 = vmatprep.subr.mxu0 0.0
    %319 = vmatpush1.msra.mxu0 0.0
    %320 = vmatprep.subr.mxu0 0.0
    %321 = vmatpush1.msra.mxu0 0.0
    %322 = vmatprep.mubr.f32.mxu0 0.0
    %323 = vmatmul.mubr.f32.gmra.mrb[0].mxu0 %v253
    %v324 = vpop.f32.mrb[0].mxu0
    %v325 = vadd.f32 %v249, %v324
    %v326 = vpop.f32.mrb[0].mxu0
    %327 = vdwg.mxu0
    %v328 = vld [vmem:[#allocation2] sm:$0xff]
    %v329 = vld [vmem:[#allocation8] sm:$0x1]
    %331 = vset.pattern.permute.xlu0 0
    %332 = vperm.xlu0 %331, %v328
    %v333 = vpop.permute.xlu0 %332
    %v336 = vlaneseq
    %v337 = vshrl.u32 %v336, 7
    %v338 = vsub.s32 0, %v337
    %v339 = vrot.slane %v329, %v338
    %v341 = vmul.f32 %v333, %v339
    %v342 = vadd.f32 %v325, %v341
    %v343 = vld [vmem:[#allocation13] sm:$0x1]
    %v345 = vlaneseq
    %v346 = vshrl.u32 %v345, 7
    %v347 = vsub.s32 0, %v346
    %v348 = vrot.slane %v343, %v347
    %v350 = vadd.f32 %v342, %v348
    %v351 = vmax.f32 %v350, 0.0
    %v352 = vld [vmem:[#allocation14] sm:$0xff]
    %v353 = vld [vmem:[#allocation14 + $0x8] sm:$0xff]
    %v354 = vld [vmem:[#allocation14 + $0x10] sm:$0xff]
    %v355 = vld [vmem:[#allocation14 + $0x18] sm:$0xff]
    %v356 = vld [vmem:[#allocation14 + $0x20] sm:$0xff]
    %v357 = vld [vmem:[#allocation14 + $0x28] sm:$0xff]
    %v358 = vld [vmem:[#allocation14 + $0x30] sm:$0xff]
    %v359 = vld [vmem:[#allocation14 + $0x38] sm:$0xff]
    %v360 = vld [vmem:[#allocation14 + $0x40] sm:$0xff]
    %v361 = vld [vmem:[#allocation14 + $0x48] sm:$0xff]
    %v362 = vld [vmem:[#allocation14 + $0x50] sm:$0xff]
    %v363 = vld [vmem:[#allocation14 + $0x58] sm:$0xff]
    %v364 = vld [vmem:[#allocation14 + $0x60] sm:$0xff]
    %v365 = vld [vmem:[#allocation14 + $0x68] sm:$0xff]
    %v366 = vld [vmem:[#allocation14 + $0x70] sm:$0xff]
    %v367 = vld [vmem:[#allocation14 + $0x78] sm:$0xff]
    %v368 = vld [vmem:[#allocation16] sm:$0x1]
    %v370 = vlaneseq
    %v371 = vshrl.u32 %v370, 7
    %v372 = vsub.s32 0, %v371
    %v373 = vrot.slane %v368, %v372
    %375 = vmatprep.subr.mxu0 0.0
    %376 = vmatpush1.msra.mxu0 %v352
    %377 = vmatprep.subr.mxu0 0.0
    %378 = vmatpush1.msra.mxu0 %v353
    %379 = vmatprep.subr.mxu0 0.0
    %380 = vmatpush1.msra.mxu0 %v354
    %381 = vmatprep.subr.mxu0 0.0
    %382 = vmatpush1.msra.mxu0 %v355
    %383 = vmatprep.subr.mxu0 0.0
    %384 = vmatpush1.msra.mxu0 %v356
    %385 = vmatprep.subr.mxu0 0.0
    %386 = vmatpush1.msra.mxu0 %v357
    %387 = vmatprep.subr.mxu0 0.0
    %388 = vmatpush1.msra.mxu0 %v358
    %389 = vmatprep.subr.mxu0 0.0
    %390 = vmatpush1.msra.mxu0 %v359
    %391 = vmatprep.subr.mxu0 0.0
    %392 = vmatpush1.msra.mxu0 %v360
    %393 = vmatprep.subr.mxu0 0.0
    %394 = vmatpush1.msra.mxu0 %v361
    %395 = vmatprep.subr.mxu0 0.0
    %396 = vmatpush1.msra.mxu0 %v362
    %397 = vmatprep.subr.mxu0 0.0
    %398 = vmatpush1.msra.mxu0 %v363
    %399 = vmatprep.subr.mxu0 0.0
    %400 = vmatpush1.msra.mxu0 %v364
    %401 = vmatprep.subr.mxu0 0.0
    %402 = vmatpush1.msra.mxu0 %v365
    %403 = vmatprep.subr.mxu0 0.0
    %404 = vmatpush1.msra.mxu0 %v366
    %405 = vmatprep.subr.mxu0 0.0
    %406 = vmatpush1.msra.mxu0 %v367
    %407 = vmatprep.subr.mxu0 0.0
    %408 = vmatpush1.msra.mxu0 0.0
    %409 = vmatprep.subr.mxu0 0.0
    %410 = vmatpush1.msra.mxu0 0.0
    %411 = vmatprep.subr.mxu0 0.0
    %412 = vmatpush1.msra.mxu0 0.0
    %413 = vmatprep.subr.mxu0 0.0
    %414 = vmatpush1.msra.mxu0 0.0
    %415 = vmatprep.subr.mxu0 0.0
    %416 = vmatpush1.msra.mxu0 0.0
    %417 = vmatprep.subr.mxu0 0.0
    %418 = vmatpush1.msra.mxu0 0.0
    %419 = vmatprep.subr.mxu0 0.0
    %420 = vmatpush1.msra.mxu0 0.0
    %421 = vmatprep.subr.mxu0 0.0
    %422 = vmatpush1.msra.mxu0 0.0
    %423 = vmatprep.subr.mxu0 0.0
    %424 = vmatpush1.msra.mxu0 0.0
    %425 = vmatprep.subr.mxu0 0.0
    %426 = vmatpush1.msra.mxu0 0.0
    %427 = vmatprep.subr.mxu0 0.0
    %428 = vmatpush1.msra.mxu0 0.0
    %429 = vmatprep.subr.mxu0 0.0
    %430 = vmatpush1.msra.mxu0 0.0
    %431 = vmatprep.subr.mxu0 0.0
    %432 = vmatpush1.msra.mxu0 0.0
    %433 = vmatprep.subr.mxu0 0.0
    %434 = vmatpush1.msra.mxu0 0.0
    %435 = vmatprep.subr.mxu0 0.0
    %436 = vmatpush1.msra.mxu0 0.0
    %437 = vmatprep.subr.mxu0 0.0
    %438 = vmatpush1.msra.mxu0 0.0
    %439 = vmatprep.mubr.f32.mxu0 0.0
    %440 = vmatmul.mubr.f32.gmra.mrb[0].mxu0 %v351
    %v441 = vpop.f32.mrb[0].mxu0
    %v442 = vadd.f32 %v373, %v441
    %v443 = vpop.f32.mrb[0].mxu0
    %444 = vdwg.mxu0
    %v445 = vmax.f32 %v442, 0.0
    %v446 = vld [vmem:[#allocation17] sm:$0xff]
    %v447 = vld [vmem:[#allocation17 + $0x8] sm:$0xff]
    %v448 = vld [vmem:[#allocation17 + $0x10] sm:$0xff]
    %v449 = vld [vmem:[#allocation17 + $0x18] sm:$0xff]
    %v450 = vld [vmem:[#allocation17 + $0x20] sm:$0xff]
    %v451 = vld [vmem:[#allocation17 + $0x28] sm:$0xff]
    %v452 = vld [vmem:[#allocation17 + $0x30] sm:$0xff]
    %v453 = vld [vmem:[#allocation17 + $0x38] sm:$0xff]
    %v454 = vld [vmem:[#allocation17 + $0x40] sm:$0xff]
    %v455 = vld [vmem:[#allocation17 + $0x48] sm:$0xff]
    %v456 = vld [vmem:[#allocation17 + $0x50] sm:$0xff]
    %v457 = vld [vmem:[#allocation17 + $0x58] sm:$0xff]
    %v458 = vld [vmem:[#allocation17 + $0x60] sm:$0xff]
    %v459 = vld [vmem:[#allocation17 + $0x68] sm:$0xff]
    %v460 = vld [vmem:[#allocation17 + $0x70] sm:$0xff]
    %v461 = vld [vmem:[#allocation17 + $0x78] sm:$0xff]
    %v462 = vld [vmem:[#allocation19] sm:$0x1]
    %v464 = vlaneseq
    %v465 = vshrl.u32 %v464, 7
    %v466 = vsub.s32 0, %v465
    %v467 = vrot.slane %v462, %v466
    %469 = vmatprep.subr.mxu0 0.0
    %470 = vmatpush1.msra.mxu0 %v446
    %471 = vmatprep.subr.mxu0 0.0
    %472 = vmatpush1.msra.mxu0 %v447
    %473 = vmatprep.subr.mxu0 0.0
    %474 = vmatpush1.msra.mxu0 %v448
    %475 = vmatprep.subr.mxu0 0.0
    %476 = vmatpush1.msra.mxu0 %v449
    %477 = vmatprep.subr.mxu0 0.0
    %478 = vmatpush1.msra.mxu0 %v450
    %479 = vmatprep.subr.mxu0 0.0
    %480 = vmatpush1.msra.mxu0 %v451
    %481 = vmatprep.subr.mxu0 0.0
    %482 = vmatpush1.msra.mxu0 %v452
    %483 = vmatprep.subr.mxu0 0.0
    %484 = vmatpush1.msra.mxu0 %v453
    %485 = vmatprep.subr.mxu0 0.0
    %486 = vmatpush1.msra.mxu0 %v454
    %487 = vmatprep.subr.mxu0 0.0
    %488 = vmatpush1.msra.mxu0 %v455
    %489 = vmatprep.subr.mxu0 0.0
    %490 = vmatpush1.msra.mxu0 %v456
    %491 = vmatprep.subr.mxu0 0.0
    %492 = vmatpush1.msra.mxu0 %v457
    %493 = vmatprep.subr.mxu0 0.0
    %494 = vmatpush1.msra.mxu0 %v458
    %495 = vmatprep.subr.mxu0 0.0
    %496 = vmatpush1.msra.mxu0 %v459
    %497 = vmatprep.subr.mxu0 0.0
    %498 = vmatpush1.msra.mxu0 %v460
    %499 = vmatprep.subr.mxu0 0.0
    %500 = vmatpush1.msra.mxu0 %v461
    %501 = vmatprep.subr.mxu0 0.0
    %502 = vmatpush1.msra.mxu0 0.0
    %503 = vmatprep.subr.mxu0 0.0
    %504 = vmatpush1.msra.mxu0 0.0
    %505 = vmatprep.subr.mxu0 0.0
    %506 = vmatpush1.msra.mxu0 0.0
    %507 = vmatprep.subr.mxu0 0.0
    %508 = vmatpush1.msra.mxu0 0.0
    %509 = vmatprep.subr.mxu0 0.0
    %510 = vmatpush1.msra.mxu0 0.0
    %511 = vmatprep.subr.mxu0 0.0
    %512 = vmatpush1.msra.mxu0 0.0
    %513 = vmatprep.subr.mxu0 0.0
    %514 = vmatpush1.msra.mxu0 0.0
    %515 = vmatprep.subr.mxu0 0.0
    %516 = vmatpush1.msra.mxu0 0.0
    %517 = vmatprep.subr.mxu0 0.0
    %518 = vmatpush1.msra.mxu0 0.0
    %519 = vmatprep.subr.mxu0 0.0
    %520 = vmatpush1.msra.mxu0 0.0
    %521 = vmatprep.subr.mxu0 0.0
    %522 = vmatpush1.msra.mxu0 0.0
    %523 = vmatprep.subr.mxu0 0.0
    %524 = vmatpush1.msra.mxu0 0.0
    %525 = vmatprep.subr.mxu0 0.0
    %526 = vmatpush1.msra.mxu0 0.0
    %527 = vmatprep.subr.mxu0 0.0
    %528 = vmatpush1.msra.mxu0 0.0
    %529 = vmatprep.subr.mxu0 0.0
    %530 = vmatpush1.msra.mxu0 0.0
    %531 = vmatprep.subr.mxu0 0.0
    %532 = vmatpush1.msra.mxu0 0.0
    %533 = vmatprep.mubr.f32.mxu0 0.0
    %534 = vmatmul.mubr.f32.gmra.mrb[0].mxu0 %v445
    %v535 = vpop.f32.mrb[0].mxu0
    %v536 = vadd.f32 %v467, %v535
    %v537 = vpop.f32.mrb[0].mxu0
    %538 = vdwg.mxu0
    %539 = vst [vmem:[#allocation20] sm:$0xff] %v536
    // Predicated region
    $region90: #{_b_network_impl.1} parent=1 // pred_check
      _
    $region91: #{_b_network_impl.1} parent=1 // pred_check_branch
      %541 = sbr.rel (0) target = $region93
    $region92: #{_b_network_impl.1} parent=1 // pred_region
      %s543 = ssub.s32 128, 128
      %544 = vsyncadd [#allocation4], %s543
      %s546 = sshll.u32 [#allocation20], 4
      %s547 = int_to_ptr.vmem [resolvable:$true] %s546
      %549 = dma.vmem_to_hbm [thread:$0]  %s547, 128, %s11, [#allocation4]
    $region93: #{_b_network_impl.1} parent=1 // pred_fallthru
      _
    // Predicated region
    $region94: #{_b_network_impl.1} parent=1 // pred_check
      _
    $region95: #{_b_network_impl.1} parent=1 // pred_check_branch
      %551 = sbr.rel (0) target = $region97
    $region96: #{_b_network_impl.1} parent=1 // pred_region
      %552 = dma.done [#allocation4], 128
    $region97: #{_b_network_impl.1} parent=1 // pred_fallthru
      _
    %553 = vsyncpa [#allocation3], 1
    %554 = vsyncpa [#allocation6], 1
    %555 = vsyncpa [#allocation9], 1
    %556 = vsyncpa [#allocation12], 1
    %557 = vsyncpa [#allocation15], 1
    %558 = vsyncpa [#allocation18], 1
    %559 = vsyncpa [#allocation4], 1

</llo_original>
